<compile_context>
chip_gen: v7x
topology: tpu7x:2x2x1
jax: 0.10.0
libtpu: 0.0.40
codegen_flags: <defaults>
</compile_context>

<pallas_src>
import functools
import math

import jax
import jax.numpy as jnp
from jax.experimental import pallas as pl
from jax.experimental.pallas import tpu as pltpu


_LANE = 128
_SUBLANE = 8


def _round_up(x, m):
    return ((x + m - 1) // m) * m


def _pad_feat(d):
    # Interior feature dims: pad to the 128-lane vreg width; once a dim is
    # already >= 256, align to 256 so v6e/v7x 256x256 MXU tiles are full.
    align = 256 if d >= 256 else _LANE
    return _round_up(d, align)


def _activation(h, name):
    # Shared between the kernel and the pure-JAX reference => exact parity.
    if name == "relu":
        return jnp.maximum(h, 0.0)
    elif name == "sigmoid":
        # sigmoid(h) == 0.5*tanh(0.5*h) + 0.5 : tanh goes to the (otherwise
        # idle) EUP slot and avoids the VALU divide of 1/(1+exp(-h)).
        return 0.5 * jnp.tanh(0.5 * h) + 0.5
    elif name == "tanh":
        return jnp.tanh(h)
    raise ValueError(f"unknown activation {name!r}")


def _mlp_ae_kernel(x_ref, *refs, n_layers, act_flags, activation, compute_dtype):
    """Fused MLP autoencoder forward on one (TB, in_dim) batch tile.

    refs = (w0, b0, w1, b1, ..., w_{L-1}, b_{L-1}, out_ref).
    wi: (fi_pad, fo_pad) in `compute_dtype`; bi: (1, fo_pad) f32.
    First layer K dim and last layer N dim are unpadded (match x / out).
    """
    out_ref = refs[-1]
    h = x_ref[...]
    for i in range(n_layers):
        w = refs[2 * i][...]
        b = refs[2 * i + 1][...]
        # MXU matmul with native-width (bf16) operands, f32 accumulation.
        acc = jnp.dot(h.astype(compute_dtype), w, preferred_element_type=jnp.float32)
        acc = acc + b  # bias add + activation stay in f32 (VPU/EUP).
        if act_flags[i]:
            acc = _activation(acc, activation)
        h = acc
    # TODO(synk): nn.Dropout(p=0.1) after the first encoder activation is the
    # identity in eval mode; training-mode dropout would need pltpu.prng_*.
    out_ref[...] = h.astype(out_ref.dtype)


class MLPAutoencoderPallas:
    def __init__(self, nb_features, seq_length, latent_dim, nb_layers,
                 hidden_units, activation, key, compute_dtype=jnp.bfloat16):
        self.nb_features = nb_features
        self.seq_length = seq_length
        self.activation = activation
        self.compute_dtype = compute_dtype
        self.in_dim = nb_features * seq_length
        in_dim = self.in_dim

        # Layer plan mirrors the PyTorch Sequential construction order exactly.
        enc = [(in_dim, hidden_units[0], True)]
        dec = [(latent_dim, hidden_units[-1], True)]
        if nb_layers > 1:
            for layer in range(1, nb_layers):
                enc.append((hidden_units[layer - 1], hidden_units[layer], True))
                dec.append((hidden_units[-layer], hidden_units[-layer - 1], True))
        enc.append((hidden_units[-1], latent_dim, False))
        dec.append((hidden_units[0], in_dim, False))
        self.layer_plan = enc + dec
        self.act_flags = tuple(f for _, _, f in self.layer_plan)
        n = len(self.layer_plan)

        # torch.nn.Linear-style init (uniform +-1/sqrt(fan_in)) on the TRUE
        # (unpadded) dims, then zero-pad interior dims.  The first layer's K
        # dim matches unpadded x; the last layer's N dim matches unpadded out.
        self.params = []
        keys = jax.random.split(key, n)
        for idx, (k, (fi, fo, _)) in enumerate(zip(keys, self.layer_plan)):
            kw, kb = jax.random.split(k)
            bound = 1.0 / math.sqrt(fi)
            w = jax.random.uniform(kw, (fi, fo), jnp.float32, -bound, bound)
            b = jax.random.uniform(kb, (1, fo), jnp.float32, -bound, bound)
            fi_p = fi if idx == 0 else _pad_feat(fi)
            fo_p = fo if idx == n - 1 else _pad_feat(fo)
            w = jnp.pad(w, ((0, fi_p - fi), (0, fo_p - fo))).astype(compute_dtype)
            b = jnp.pad(b, ((0, 0), (0, fo_p - fo)))  # bias stays f32
            self.params.append((w, b))

    def __call__(self, x, batch_tile=None, out_dtype=None):
        B = x.shape[0]
        in_dim = self.in_dim
        out_dtype = x.dtype if out_dtype is None else jnp.dtype(out_dtype)
        x_flat = x.reshape(B, in_dim)  # metadata-only reshape, no HBM pass

        # Batch tile: multiple of the 8-row sublane.  Large tiles (<=512)
        # amortize the ~0.35us per-grid-step overhead, but split into >=2 tiles
        # whenever the batch allows so the v7x megacore shards the "parallel"
        # batch axis across both TensorCores (neutral on v5e/v6e).
        if batch_tile is None:
            half = _round_up(-(-B // 2), _SUBLANE)
            batch_tile = max(_SUBLANE, min(512, half))
        tb = _round_up(batch_tile, _SUBLANE)
        n_tiles = -(-B // tb)  # ragged last tile: OOB rows are masked by Pallas

        flat_params = []
        for w, b in self.params:
            flat_params.extend((w, b))
        n_layers = len(self.layer_plan)

        kernel = functools.partial(
            _mlp_ae_kernel, n_layers=n_layers, act_flags=self.act_flags,
            activation=self.activation, compute_dtype=self.compute_dtype)

        # Weights/biases: full-extent blocks with constant index maps (stay
        # VMEM-resident across all batch tiles); single-buffered because their
        # block never changes -> halves their VMEM footprint.
        def resident_spec(shape):
            return pl.BlockSpec(shape, lambda i: (0,) * len(shape),
                                pipeline_mode=pl.Buffered(1))

        in_specs = [pl.BlockSpec((tb, in_dim), lambda i: (i, 0))]
        in_specs += [resident_spec(p.shape) for p in flat_params]
        out_spec = pl.BlockSpec((tb, in_dim), lambda i: (i, 0))

        # ---- VMEM budget / compiler params --------------------------------
        def nbytes(a):
            return a.size * a.dtype.itemsize

        w_bytes = sum(nbytes(p) for p in flat_params)           # single-buffered
        io_bytes = 2 * tb * in_dim * (x.dtype.itemsize + out_dtype.itemsize)
        max_width = max(max(w.shape) for w, _ in self.params)
        scratch_bytes = 4 * tb * max_width * 4                   # f32 intermediates headroom
        vmem_need = w_bytes + io_bytes + scratch_bytes + (2 << 20)

        try:
            cap = int(pltpu.get_tpu_info().vmem_capacity_bytes)
        except Exception:
            cap = 64 << 20  # conservative: v7x per-TensorCore VMEM
        if w_bytes + scratch_bytes > int(0.75 * cap):
            # TODO(synk): weight set exceeds the per-core VMEM-resident budget
            # (realistic on v7x's 64 MiB); would need a streamed-weights path
            # (memory_space=pl.ANY + pltpu.emit_pipeline per large layer).
            raise NotImplementedError(
                "weight set too large to keep VMEM-resident on this chip")
        # Always pass a limit: v5e's default scoped VMEM limit is only 16 MiB,
        # so any need in the 16-32 MiB range would otherwise silently fail/shrink.
        vmem_limit = int(min(max(vmem_need, 32 << 20), int(0.9 * cap)))

        flops = 2 * B * sum(w.shape[0] * w.shape[1] for w, _ in self.params)
        transcendentals = 0
        if self.activation != "relu":
            transcendentals = B * sum(
                w.shape[1] for (w, _), f in zip(self.params, self.act_flags) if f)
        bytes_accessed = (B * in_dim * x.dtype.itemsize + w_bytes
                          + B * in_dim * out_dtype.itemsize)

        out = pl.pallas_call(
            kernel,
            out_shape=jax.ShapeDtypeStruct((B, in_dim), out_dtype),
            grid=(n_tiles,),
            in_specs=in_specs,
            out_specs=out_spec,
            compiler_params=pltpu.CompilerParams(
                # TODO(synk): on v7x, pltpu.CORE_PARALLEL / core_map could force
                # explicit 2-way TC sharding; plain "parallel" kept for
                # portability across v5e/v6e/v7x.
                dimension_semantics=("parallel",),
                vmem_limit_bytes=vmem_limit,
            ),
            cost_estimate=pl.CostEstimate(
                flops=flops, transcendentals=transcendentals,
                bytes_accessed=bytes_accessed),
        )(x_flat, *flat_params)

        return out.reshape(B, self.seq_length, self.nb_features)

    def reference(self, x):
        """Pure-JAX reference mirroring the kernel math (same padding/dtypes)."""
        B = x.shape[0]
        h = x.reshape(B, self.in_dim)
        for (w, b), flag in zip(self.params, self.act_flags):
            h = jnp.dot(h.astype(self.compute_dtype), w,
                        preferred_element_type=jnp.float32) + b
            if flag:
                h = _activation(h, self.activation)
        return h.astype(x.dtype).reshape(B, self.seq_length, self.nb_features)


if __name__ == "__main__":
    nb_features = 4
    seq_length = 8
    latent_dim = 8
    nb_layers = 2
    hidden_units = [32, 32]

    key = jax.random.PRNGKey(0)
    k_params, k_x1, k_x2, k_x3 = jax.random.split(key, 4)

    # Run 1: tiny batch (2), ReLU, single (ragged) grid step with unpadded I/O.
    model = MLPAutoencoderPallas(nb_features, seq_length, latent_dim, nb_layers,
                                 hidden_units, "relu", k_params)
    x = jax.random.normal(k_x1, (2, seq_length, nb_features), jnp.float32)
    out = jax.block_until_ready(model(x))
    ref = model.reference(x)
    assert out.shape == (2, seq_length, nb_features), out.shape
    assert jnp.allclose(out, ref, atol=2e-3, rtol=2e-3), \
        float(jnp.max(jnp.abs(out - ref)))

    # Run 2: multi-tile grid (batch 16, tile 8 -> grid=(2,)) exercising the
    # parallel batch axis, single-buffered resident weights, and the sigmoid
    # (EUP tanh-form) activation path.
    model2 = MLPAutoencoderPallas(nb_features, seq_length, latent_dim, nb_layers,
                                  hidden_units, "sigmoid", k_params)
    x2 = jax.random.normal(k_x2, (16, seq_length, nb_features), jnp.float32)
    out2 = jax.block_until_ready(model2(x2, batch_tile=8))
    ref2 = model2.reference(x2)
    assert out2.shape == (16, seq_length, nb_features), out2.shape
    assert jnp.allclose(out2, ref2, atol=2e-3, rtol=2e-3), \
        float(jnp.max(jnp.abs(out2 - ref2)))

    # Run 3: default tiling with a non-divisible batch (20 -> 2 tiles of 16,
    # second tile ragged/masked) and the tanh activation path.
    model3 = MLPAutoencoderPallas(nb_features, seq_length, latent_dim, nb_layers,
                                  hidden_units, "tanh", k_params)
    x3 = jax.random.normal(k_x3, (20, seq_length, nb_features), jnp.float32)
    out3 = jax.block_until_ready(model3(x3))
    ref3 = model3.reference(x3)
    assert out3.shape == (20, seq_length, nb_features), out3.shape
    assert jnp.allclose(out3, ref3, atol=2e-3, rtol=2e-3), \
        float(jnp.max(jnp.abs(out3 - ref3)))

    print("KERNEL_OK")
</pallas_src>

<mosaic_0001>
module attributes {stable_mosaic.version = 11 : i64} {
  func.func @_mlp_ae_kernel(%arg0: i32, %arg1: memref<8x32xf32, #tpu.memory_space<vmem>>, %arg2: memref<32x128xbf16, #tpu.memory_space<vmem>>, %arg3: memref<1x128xf32, #tpu.memory_space<vmem>>, %arg4: memref<128x128xbf16, #tpu.memory_space<vmem>>, %arg5: memref<1x128xf32, #tpu.memory_space<vmem>>, %arg6: memref<128x128xbf16, #tpu.memory_space<vmem>>, %arg7: memref<1x128xf32, #tpu.memory_space<vmem>>, %arg8: memref<128x128xbf16, #tpu.memory_space<vmem>>, %arg9: memref<1x128xf32, #tpu.memory_space<vmem>>, %arg10: memref<128x128xbf16, #tpu.memory_space<vmem>>, %arg11: memref<1x128xf32, #tpu.memory_space<vmem>>, %arg12: memref<128x32xbf16, #tpu.memory_space<vmem>>, %arg13: memref<1x32xf32, #tpu.memory_space<vmem>>, %arg14: memref<8x32xf32, #tpu.memory_space<vmem>>) attributes {dimension_semantics = [#tpu.dimension_semantics<parallel>], iteration_bounds = array<i64: 1>, scalar_prefetch = 0 : i64, scratch_operands = 0 : i64, tpu.core_type = #tpu.core_type<tc>, window_params = [{transform_indices = @transform_0, window_bounds = array<i64: 8, 32>}, {pipeline_mode = #tpu.pipeline_mode<synchronous>, transform_indices = @transform_1, window_bounds = array<i64: 32, 128>}, {pipeline_mode = #tpu.pipeline_mode<synchronous>, transform_indices = @transform_2, window_bounds = array<i64: 1, 128>}, {pipeline_mode = #tpu.pipeline_mode<synchronous>, transform_indices = @transform_3, window_bounds = array<i64: 128, 128>}, {pipeline_mode = #tpu.pipeline_mode<synchronous>, transform_indices = @transform_4, window_bounds = array<i64: 1, 128>}, {pipeline_mode = #tpu.pipeline_mode<synchronous>, transform_indices = @transform_5, window_bounds = array<i64: 128, 128>}, {pipeline_mode = #tpu.pipeline_mode<synchronous>, transform_indices = @transform_6, window_bounds = array<i64: 1, 128>}, {pipeline_mode = #tpu.pipeline_mode<synchronous>, transform_indices = @transform_7, window_bounds = array<i64: 128, 128>}, {pipeline_mode = #tpu.pipeline_mode<synchronous>, transform_indices = @transform_8, window_bounds = array<i64: 1, 128>}, {pipeline_mode = #tpu.pipeline_mode<synchronous>, transform_indices = @transform_9, window_bounds = array<i64: 128, 128>}, {pipeline_mode = #tpu.pipeline_mode<synchronous>, transform_indices = @transform_10, window_bounds = array<i64: 1, 128>}, {pipeline_mode = #tpu.pipeline_mode<synchronous>, transform_indices = @transform_11, window_bounds = array<i64: 128, 32>}, {pipeline_mode = #tpu.pipeline_mode<synchronous>, transform_indices = @transform_12, window_bounds = array<i64: 1, 32>}, {transform_indices = @transform_13, window_bounds = array<i64: 8, 32>}]} {
    %c0 = arith.constant 0 : index
    %c0_0 = arith.constant 0 : index
    %0 = vector.load %arg1[%c0, %c0_0] : memref<8x32xf32, #tpu.memory_space<vmem>>, vector<8x32xf32>
    %c0_1 = arith.constant 0 : index
    %c0_2 = arith.constant 0 : index
    %1 = vector.load %arg2[%c0_1, %c0_2] : memref<32x128xbf16, #tpu.memory_space<vmem>>, vector<32x128xbf16>
    %c0_3 = arith.constant 0 : index
    %c0_4 = arith.constant 0 : index
    %2 = vector.load %arg3[%c0_3, %c0_4] : memref<1x128xf32, #tpu.memory_space<vmem>>, vector<1x128xf32>
    %3 = arith.truncf %0 : vector<8x32xf32> to vector<8x32xbf16>
    %cst = arith.constant dense<0.000000e+00> : vector<8x128xf32>
    %4 = tpu.matmul %3, %1, %cst {dimension_numbers = #tpu.dot_dimension_numbers<[1], [0], [0], [1], [0, 0, 1, 1], [], []>} : vector<8x32xbf16>, vector<32x128xbf16>, vector<8x128xf32> -> vector<8x128xf32>
    %5 = vector.broadcast %2 : vector<1x128xf32> to vector<8x128xf32>
    %6 = arith.addf %4, %5 : vector<8x128xf32>
    %cst_5 = arith.constant 0.000000e+00 : f32
    %7 = vector.broadcast %cst_5 : f32 to vector<8x128xf32>
    %8 = arith.maximumf %6, %7 : vector<8x128xf32>
    %c0_6 = arith.constant 0 : index
    %c0_7 = arith.constant 0 : index
    %9 = vector.load %arg4[%c0_6, %c0_7] : memref<128x128xbf16, #tpu.memory_space<vmem>>, vector<128x128xbf16>
    %c0_8 = arith.constant 0 : index
    %c0_9 = arith.constant 0 : index
    %10 = vector.load %arg5[%c0_8, %c0_9] : memref<1x128xf32, #tpu.memory_space<vmem>>, vector<1x128xf32>
    %11 = arith.truncf %8 : vector<8x128xf32> to vector<8x128xbf16>
    %cst_10 = arith.constant dense<0.000000e+00> : vector<8x128xf32>
    %12 = tpu.matmul %11, %9, %cst_10 {dimension_numbers = #tpu.dot_dimension_numbers<[1], [0], [0], [1], [0, 0, 1, 1], [], []>} : vector<8x128xbf16>, vector<128x128xbf16>, vector<8x128xf32> -> vector<8x128xf32>
    %13 = vector.broadcast %10 : vector<1x128xf32> to vector<8x128xf32>
    %14 = arith.addf %12, %13 : vector<8x128xf32>
    %cst_11 = arith.constant 0.000000e+00 : f32
    %15 = vector.broadcast %cst_11 : f32 to vector<8x128xf32>
    %16 = arith.maximumf %14, %15 : vector<8x128xf32>
    %c0_12 = arith.constant 0 : index
    %c0_13 = arith.constant 0 : index
    %17 = vector.load %arg6[%c0_12, %c0_13] : memref<128x128xbf16, #tpu.memory_space<vmem>>, vector<128x128xbf16>
    %c0_14 = arith.constant 0 : index
    %c0_15 = arith.constant 0 : index
    %18 = vector.load %arg7[%c0_14, %c0_15] : memref<1x128xf32, #tpu.memory_space<vmem>>, vector<1x128xf32>
    %19 = arith.truncf %16 : vector<8x128xf32> to vector<8x128xbf16>
    %cst_16 = arith.constant dense<0.000000e+00> : vector<8x128xf32>
    %20 = tpu.matmul %19, %17, %cst_16 {dimension_numbers = #tpu.dot_dimension_numbers<[1], [0], [0], [1], [0, 0, 1, 1], [], []>} : vector<8x128xbf16>, vector<128x128xbf16>, vector<8x128xf32> -> vector<8x128xf32>
    %21 = vector.broadcast %18 : vector<1x128xf32> to vector<8x128xf32>
    %22 = arith.addf %20, %21 : vector<8x128xf32>
    %c0_17 = arith.constant 0 : index
    %c0_18 = arith.constant 0 : index
    %23 = vector.load %arg8[%c0_17, %c0_18] : memref<128x128xbf16, #tpu.memory_space<vmem>>, vector<128x128xbf16>
    %c0_19 = arith.constant 0 : index
    %c0_20 = arith.constant 0 : index
    %24 = vector.load %arg9[%c0_19, %c0_20] : memref<1x128xf32, #tpu.memory_space<vmem>>, vector<1x128xf32>
    %25 = arith.truncf %22 : vector<8x128xf32> to vector<8x128xbf16>
    %cst_21 = arith.constant dense<0.000000e+00> : vector<8x128xf32>
    %26 = tpu.matmul %25, %23, %cst_21 {dimension_numbers = #tpu.dot_dimension_numbers<[1], [0], [0], [1], [0, 0, 1, 1], [], []>} : vector<8x128xbf16>, vector<128x128xbf16>, vector<8x128xf32> -> vector<8x128xf32>
    %27 = vector.broadcast %24 : vector<1x128xf32> to vector<8x128xf32>
    %28 = arith.addf %26, %27 : vector<8x128xf32>
    %cst_22 = arith.constant 0.000000e+00 : f32
    %29 = vector.broadcast %cst_22 : f32 to vector<8x128xf32>
    %30 = arith.maximumf %28, %29 : vector<8x128xf32>
    %c0_23 = arith.constant 0 : index
    %c0_24 = arith.constant 0 : index
    %31 = vector.load %arg10[%c0_23, %c0_24] : memref<128x128xbf16, #tpu.memory_space<vmem>>, vector<128x128xbf16>
    %c0_25 = arith.constant 0 : index
    %c0_26 = arith.constant 0 : index
    %32 = vector.load %arg11[%c0_25, %c0_26] : memref<1x128xf32, #tpu.memory_space<vmem>>, vector<1x128xf32>
    %33 = arith.truncf %30 : vector<8x128xf32> to vector<8x128xbf16>
    %cst_27 = arith.constant dense<0.000000e+00> : vector<8x128xf32>
    %34 = tpu.matmul %33, %31, %cst_27 {dimension_numbers = #tpu.dot_dimension_numbers<[1], [0], [0], [1], [0, 0, 1, 1], [], []>} : vector<8x128xbf16>, vector<128x128xbf16>, vector<8x128xf32> -> vector<8x128xf32>
    %35 = vector.broadcast %32 : vector<1x128xf32> to vector<8x128xf32>
    %36 = arith.addf %34, %35 : vector<8x128xf32>
    %cst_28 = arith.constant 0.000000e+00 : f32
    %37 = vector.broadcast %cst_28 : f32 to vector<8x128xf32>
    %38 = arith.maximumf %36, %37 : vector<8x128xf32>
    %c0_29 = arith.constant 0 : index
    %c0_30 = arith.constant 0 : index
    %39 = vector.load %arg12[%c0_29, %c0_30] : memref<128x32xbf16, #tpu.memory_space<vmem>>, vector<128x32xbf16>
    %c0_31 = arith.constant 0 : index
    %c0_32 = arith.constant 0 : index
    %40 = vector.load %arg13[%c0_31, %c0_32] : memref<1x32xf32, #tpu.memory_space<vmem>>, vector<1x32xf32>
    %41 = arith.truncf %38 : vector<8x128xf32> to vector<8x128xbf16>
    %cst_33 = arith.constant dense<0.000000e+00> : vector<8x32xf32>
    %42 = tpu.matmul %41, %39, %cst_33 {dimension_numbers = #tpu.dot_dimension_numbers<[1], [0], [0], [1], [0, 0, 1, 1], [], []>} : vector<8x128xbf16>, vector<128x32xbf16>, vector<8x32xf32> -> vector<8x32xf32>
    %43 = vector.broadcast %40 : vector<1x32xf32> to vector<8x32xf32>
    %44 = arith.addf %42, %43 : vector<8x32xf32>
    %c0_34 = arith.constant 0 : index
    %c0_35 = arith.constant 0 : index
    %45 = vector.load %arg14[%c0_34, %c0_35] : memref<8x32xf32, #tpu.memory_space<vmem>>, vector<8x32xf32>
    tpu.vector_store %arg14[%c0_34, %c0_35], %44 {strides = array<i32>} : memref<8x32xf32, #tpu.memory_space<vmem>>, vector<8x32xf32>,
    return
  }
  func.func @transform_0(%arg0: i32) -> (i32, i32) {
    %c0_i32 = arith.constant 0 : i32
    %c0_i32_0 = arith.constant 0 : i32
    return %arg0, %c0_i32 : i32, i32
  }
  func.func @transform_1(%arg0: i32) -> (i32, i32) {
    %c0_i32 = arith.constant 0 : i32
    %c0_i32_0 = arith.constant 0 : i32
    %c0_i32_1 = arith.constant 0 : i32
    return %c0_i32, %c0_i32_0 : i32, i32
  }
  func.func @transform_2(%arg0: i32) -> (i32, i32) {
    %c0_i32 = arith.constant 0 : i32
    %c0_i32_0 = arith.constant 0 : i32
    %c0_i32_1 = arith.constant 0 : i32
    return %c0_i32, %c0_i32_0 : i32, i32
  }
  func.func @transform_3(%arg0: i32) -> (i32, i32) {
    %c0_i32 = arith.constant 0 : i32
    %c0_i32_0 = arith.constant 0 : i32
    %c0_i32_1 = arith.constant 0 : i32
    return %c0_i32, %c0_i32_0 : i32, i32
  }
  func.func @transform_4(%arg0: i32) -> (i32, i32) {
    %c0_i32 = arith.constant 0 : i32
    %c0_i32_0 = arith.constant 0 : i32
    %c0_i32_1 = arith.constant 0 : i32
    return %c0_i32, %c0_i32_0 : i32, i32
  }
  func.func @transform_5(%arg0: i32) -> (i32, i32) {
    %c0_i32 = arith.constant 0 : i32
    %c0_i32_0 = arith.constant 0 : i32
    %c0_i32_1 = arith.constant 0 : i32
    return %c0_i32, %c0_i32_0 : i32, i32
  }
  func.func @transform_6(%arg0: i32) -> (i32, i32) {
    %c0_i32 = arith.constant 0 : i32
    %c0_i32_0 = arith.constant 0 : i32
    %c0_i32_1 = arith.constant 0 : i32
    return %c0_i32, %c0_i32_0 : i32, i32
  }
  func.func @transform_7(%arg0: i32) -> (i32, i32) {
    %c0_i32 = arith.constant 0 : i32
    %c0_i32_0 = arith.constant 0 : i32
    %c0_i32_1 = arith.constant 0 : i32
    return %c0_i32, %c0_i32_0 : i32, i32
  }
  func.func @transform_8(%arg0: i32) -> (i32, i32) {
    %c0_i32 = arith.constant 0 : i32
    %c0_i32_0 = arith.constant 0 : i32
    %c0_i32_1 = arith.constant 0 : i32
    return %c0_i32, %c0_i32_0 : i32, i32
  }
  func.func @transform_9(%arg0: i32) -> (i32, i32) {
    %c0_i32 = arith.constant 0 : i32
    %c0_i32_0 = arith.constant 0 : i32
    %c0_i32_1 = arith.constant 0 : i32
    return %c0_i32, %c0_i32_0 : i32, i32
  }
  func.func @transform_10(%arg0: i32) -> (i32, i32) {
    %c0_i32 = arith.constant 0 : i32
    %c0_i32_0 = arith.constant 0 : i32
    %c0_i32_1 = arith.constant 0 : i32
    return %c0_i32, %c0_i32_0 : i32, i32
  }
  func.func @transform_11(%arg0: i32) -> (i32, i32) {
    %c0_i32 = arith.constant 0 : i32
    %c0_i32_0 = arith.constant 0 : i32
    %c0_i32_1 = arith.constant 0 : i32
    return %c0_i32, %c0_i32_0 : i32, i32
  }
  func.func @transform_12(%arg0: i32) -> (i32, i32) {
    %c0_i32 = arith.constant 0 : i32
    %c0_i32_0 = arith.constant 0 : i32
    %c0_i32_1 = arith.constant 0 : i32
    return %c0_i32, %c0_i32_0 : i32, i32
  }
  func.func @transform_13(%arg0: i32) -> (i32, i32) {
    %c0_i32 = arith.constant 0 : i32
    %c0_i32_0 = arith.constant 0 : i32
    return %arg0, %c0_i32 : i32, i32
  }
}

</mosaic_0001>

<llo_original>
// kernel: tpu_custom_call.1
$region0: #{tpu_custom_call.1}
  #allocation0 [shape = 'u32[]', space=smem, size = 0x4, offset = 0x4, fixed_abs, tag = 'smem constant byte address 0x4 - core index']
  #allocation1 [shape = 'u32[144,128]{1,0:T(1,128)}', space=vmem, size = 0x12000, scoped, tag = 'internal scratch']
  %s0 = inlined_call_operand.vmem [shape: f32[2,32], index: 0, kind: input, shape index: {}]
  %s1 = inlined_call_operand.vmem [shape: bf16[32,128], index: 1, kind: input, shape index: {}]
  %s2 = inlined_call_operand.vmem [shape: f32[1,128], index: 2, kind: input, shape index: {}]
  %s3 = inlined_call_operand.vmem [shape: bf16[128,128], index: 3, kind: input, shape index: {}]
  %s4 = inlined_call_operand.vmem [shape: f32[1,128], index: 4, kind: input, shape index: {}]
  %s5 = inlined_call_operand.hbm [shape: bf16[128,128], index: 5, kind: input, shape index: {}]
  %s6 = inlined_call_operand.vmem [shape: f32[1,128], index: 6, kind: input, shape index: {}]
  %s7 = inlined_call_operand.hbm [shape: bf16[128,128], index: 7, kind: input, shape index: {}]
  %s8 = inlined_call_operand.vmem [shape: f32[1,128], index: 8, kind: input, shape index: {}]
  %s9 = inlined_call_operand.hbm [shape: bf16[128,128], index: 9, kind: input, shape index: {}]
  %s10 = inlined_call_operand.vmem [shape: f32[1,128], index: 10, kind: input, shape index: {}]
  %s11 = inlined_call_operand.vmem [shape: bf16[128,32], index: 11, kind: input, shape index: {}]
  %s12 = inlined_call_operand.vmem [shape: f32[1,32], index: 12, kind: input, shape index: {}]
  %s13 = inlined_call_operand.hbm [shape: f32[2,32], index: 13, kind: output, shape index: {}]
  %s14 = sld [smem:[#allocation0]]
  $region74: #{tpu_custom_call.1} parent=0
    _
  %s16 = ssub.s32 1, %s14
  %s17 = scalar_select 0, %s16, %s14
  $region1: #{tpu_custom_call.1} parent=0
    #allocation2 [shape = 'u8[32768]{0}', space=vmem, size = 0x8000, scoped, tag = 'input window, operand 5, single buffered']
    #allocation3 [shape = 's32[1]{0}', space=sflag, size = 0x4, scoped, tag = 'scoped memory for tpu_custom_call.1']
    #allocation4 [shape = 's32[1]{0}', space=sflag, size = 0x4, scoped, tag = 'scoped memory for tpu_custom_call.1']
    #allocation5 [shape = 'u8[32768]{0}', space=vmem, size = 0x8000, scoped, tag = 'input window, operand 7, single buffered']
    #allocation6 [shape = 's32[1]{0}', space=sflag, size = 0x4, scoped, tag = 'scoped memory for tpu_custom_call.1']
    #allocation7 [shape = 'u8[32768]{0}', space=vmem, size = 0x8000, scoped, tag = 'input window, operand 9, single buffered']
    #allocation8 [shape = 'u8[4096]{0}', space=vmem, size = 0x1000, scoped, tag = 'output window, operand 0, single buffered']
    %18 = vsyncpa [#allocation3], 0
    %19 = vsyncpa [#allocation6], 0
    %20 = vsyncpa [#allocation4], 0
    // Predicated region
    $region2: #{tpu_custom_call.1} parent=1 // pred_check
      _
    $region3: #{tpu_custom_call.1} parent=1 // pred_check_branch
      %22 = sbr.rel (0) target = $region5
    $region4: #{tpu_custom_call.1} parent=1 // pred_region
      _
    $region5: #{tpu_custom_call.1} parent=1 // pred_fallthru
      _
    // Predicated region
    $region6: #{tpu_custom_call.1} parent=1 // pred_check
      _
    $region7: #{tpu_custom_call.1} parent=1 // pred_check_branch
      %24 = sbr.rel (0) target = $region9
    $region8: #{tpu_custom_call.1} parent=1 // pred_region
      _
    $region9: #{tpu_custom_call.1} parent=1 // pred_fallthru
      _
    // Predicated region
    $region10: #{tpu_custom_call.1} parent=1 // pred_check
      _
    $region11: #{tpu_custom_call.1} parent=1 // pred_check_branch
      %26 = sbr.rel (0) target = $region13
    $region12: #{tpu_custom_call.1} parent=1 // pred_region
      _
    $region13: #{tpu_custom_call.1} parent=1 // pred_fallthru
      _
    // Predicated region
    $region14: #{tpu_custom_call.1} parent=1 // pred_check
      _
    $region15: #{tpu_custom_call.1} parent=1 // pred_check_branch
      %28 = sbr.rel (0) target = $region17
    $region16: #{tpu_custom_call.1} parent=1 // pred_region
      _
    $region17: #{tpu_custom_call.1} parent=1 // pred_fallthru
      _
    // Predicated region
    $region18: #{tpu_custom_call.1} parent=1 // pred_check
      _
    $region19: #{tpu_custom_call.1} parent=1 // pred_check_branch
      %30 = sbr.rel (0) target = $region21
    $region20: #{tpu_custom_call.1} parent=1 // pred_region
      _
    $region21: #{tpu_custom_call.1} parent=1 // pred_fallthru
      _
    // Predicated region
    $region22: #{tpu_custom_call.1} parent=1 // pred_check
      _
    $region23: #{tpu_custom_call.1} parent=1 // pred_check_branch
      %32 = sbr.rel (0) target = $region25
    $region24: #{tpu_custom_call.1} parent=1 // pred_region
      %s34 = ssub.s32 1024, 1024
      %35 = vsyncadd [#allocation3], %s34
      %s36 = sshll.u32 [#allocation2], 4
      %s37 = int_to_ptr.vmem [resolvable:$true] %s36
      %42 = dma.hbm_to_vmem [thread:$0]  %s5, 1024, %s37, [#allocation3], 64, 64, 4
    $region25: #{tpu_custom_call.1} parent=1 // pred_fallthru
      _
    // Predicated region
    $region26: #{tpu_custom_call.1} parent=1 // pred_check
      _
    $region27: #{tpu_custom_call.1} parent=1 // pred_check_branch
      %44 = sbr.rel (0) target = $region29
    $region28: #{tpu_custom_call.1} parent=1 // pred_region
      _
    $region29: #{tpu_custom_call.1} parent=1 // pred_fallthru
      _
    // Predicated region
    $region30: #{tpu_custom_call.1} parent=1 // pred_check
      _
    $region31: #{tpu_custom_call.1} parent=1 // pred_check_branch
      %46 = sbr.rel (0) target = $region33
    $region32: #{tpu_custom_call.1} parent=1 // pred_region
      %s48 = ssub.s32 1024, 1024
      %49 = vsyncadd [#allocation6], %s48
      %s50 = sshll.u32 [#allocation5], 4
      %s51 = int_to_ptr.vmem [resolvable:$true] %s50
      %56 = dma.hbm_to_vmem [thread:$0]  %s7, 1024, %s51, [#allocation6], 64, 64, 4
    $region33: #{tpu_custom_call.1} parent=1 // pred_fallthru
      _
    // Predicated region
    $region34: #{tpu_custom_call.1} parent=1 // pred_check
      _
    $region35: #{tpu_custom_call.1} parent=1 // pred_check_branch
      %58 = sbr.rel (0) target = $region37
    $region36: #{tpu_custom_call.1} parent=1 // pred_region
      _
    $region37: #{tpu_custom_call.1} parent=1 // pred_fallthru
      _
    // Predicated region
    $region38: #{tpu_custom_call.1} parent=1 // pred_check
      _
    $region39: #{tpu_custom_call.1} parent=1 // pred_check_branch
      %60 = sbr.rel (0) target = $region41
    $region40: #{tpu_custom_call.1} parent=1 // pred_region
      %s62 = ssub.s32 1024, 1024
      %63 = vsyncadd [#allocation6], %s62
      %s64 = sshll.u32 [#allocation7], 4
      %s65 = int_to_ptr.vmem [resolvable:$true] %s64
      %70 = dma.hbm_to_vmem [thread:$0]  %s9, 1024, %s65, [#allocation6], 64, 64, 4
    $region41: #{tpu_custom_call.1} parent=1 // pred_fallthru
      _
    // Predicated region
    $region42: #{tpu_custom_call.1} parent=1 // pred_check
      _
    $region43: #{tpu_custom_call.1} parent=1 // pred_check_branch
      %72 = sbr.rel (0) target = $region45
    $region44: #{tpu_custom_call.1} parent=1 // pred_region
      _
    $region45: #{tpu_custom_call.1} parent=1 // pred_fallthru
      _
    // Predicated region
    $region46: #{tpu_custom_call.1} parent=1 // pred_check
      _
    $region47: #{tpu_custom_call.1} parent=1 // pred_check_branch
      %74 = sbr.rel (0) target = $region49
    $region48: #{tpu_custom_call.1} parent=1 // pred_region
      _
    $region49: #{tpu_custom_call.1} parent=1 // pred_fallthru
      _
    // Predicated region
    $region50: #{tpu_custom_call.1} parent=1 // pred_check
      _
    $region51: #{tpu_custom_call.1} parent=1 // pred_check_branch
      %76 = sbr.rel (0) target = $region53
    $region52: #{tpu_custom_call.1} parent=1 // pred_region
      _
    $region53: #{tpu_custom_call.1} parent=1 // pred_fallthru
      _
    // Predicated region
    $region54: #{tpu_custom_call.1} parent=1 // pred_check
      _
    $region55: #{tpu_custom_call.1} parent=1 // pred_check_branch
      %78 = sbr.rel (0) target = $region57
    $region56: #{tpu_custom_call.1} parent=1 // pred_region
      %79 = dma.done [#allocation3], 1024
    $region57: #{tpu_custom_call.1} parent=1 // pred_fallthru
      _
    // Predicated region
    $region58: #{tpu_custom_call.1} parent=1 // pred_check
      _
    $region59: #{tpu_custom_call.1} parent=1 // pred_check_branch
      %81 = sbr.rel (0) target = $region61
    $region60: #{tpu_custom_call.1} parent=1 // pred_region
      %82 = dma.done [#allocation6], 1024
    $region61: #{tpu_custom_call.1} parent=1 // pred_fallthru
      _
    // Predicated region
    $region62: #{tpu_custom_call.1} parent=1 // pred_check
      _
    $region63: #{tpu_custom_call.1} parent=1 // pred_check_branch
      %84 = sbr.rel (0) target = $region65
    $region64: #{tpu_custom_call.1} parent=1 // pred_region
      %85 = dma.done [#allocation6], 1024
    $region65: #{tpu_custom_call.1} parent=1 // pred_fallthru
      _
    %v87 = vld [vmem:[%s0] sm:$0xff]
    %v88 = vld [vmem:[%s1] sm:$0xf]
    %v89 = vld [vmem:[%s1 + $0x4] sm:$0xf]
    %v90 = vld [vmem:[%s1 + $0x8] sm:$0xf]
    %v91 = vld [vmem:[%s1 + $0xc] sm:$0xf]
    %v92 = vld [vmem:[%s2] sm:$0x1]
    %v93 = vpack.c.bf16 %v87, %v87
    %v95 = vlaneseq
    %v96 = vshrl.u32 %v95, 7
    %v97 = vsub.s32 0, %v96
    %v98 = vrot.slane %v92, %v97
    %v104 = vunpack.c.l.b16 %v88
    %v105 = vunpack.c.l.b16 %v89
    %v106 = vunpack.c.l.b16 %v90
    %v107 = vunpack.c.l.b16 %v91
    %v108 = vpack.c.b16 %v105, %v104
    %v109 = vpack.c.b16 %v107, %v106
    %vm112 = vcmask 261120
    %v114 = vsel %vm112, %v93, 0
    %116 = vmatprep.subr.bf16.mxu0 0
    %117 = vmatpush1.bf16.msra.mxu0 %v108
    %118 = vmatprep.subr.bf16.mxu0 0
    %119 = vmatpush1.bf16.msra.mxu0 %v109
    %120 = vmatprep.subr.bf16.mxu0 0
    %121 = vmatpush1.bf16.msra.mxu0 0
    %122 = vmatprep.subr.bf16.mxu0 0
    %123 = vmatpush1.bf16.msra.mxu0 0
    %124 = vmatprep.subr.bf16.mxu0 0
    %125 = vmatpush1.bf16.msra.mxu0 0
    %126 = vmatprep.subr.bf16.mxu0 0
    %127 = vmatpush1.bf16.msra.mxu0 0
    %128 = vmatprep.subr.bf16.mxu0 0
    %129 = vmatpush1.bf16.msra.mxu0 0
    %130 = vmatprep.subr.bf16.mxu0 0
    %131 = vmatpush1.bf16.msra.mxu0 0
    %132 = vmatprep.subr.bf16.mxu0 0
    %133 = vmatpush1.bf16.msra.mxu0 0
    %134 = vmatprep.subr.bf16.mxu0 0
    %135 = vmatpush1.bf16.msra.mxu0 0
    %136 = vmatprep.subr.bf16.mxu0 0
    %137 = vmatpush1.bf16.msra.mxu0 0
    %138 = vmatprep.subr.bf16.mxu0 0
    %139 = vmatpush1.bf16.msra.mxu0 0
    %140 = vmatprep.subr.bf16.mxu0 0
    %141 = vmatpush1.bf16.msra.mxu0 0
    %142 = vmatprep.subr.bf16.mxu0 0
    %143 = vmatpush1.bf16.msra.mxu0 0
    %144 = vmatprep.subr.bf16.mxu0 0
    %145 = vmatpush1.bf16.msra.mxu0 0
    %146 = vmatprep.subr.bf16.mxu0 0
    %147 = vmatpush1.bf16.msra.mxu0 0
    %148 = vmatprep.mubr.bf16.mxu0 0
    %149 = vmatmul.mubr.bf16.gmra.mrb[0].mxu0 %v114
    %v150 = vpop.f32.mrb[0].mxu0
    %v151 = vadd.f32 %v98, %v150
    %v152 = vpop.f32.mrb[0].mxu0
    %v153 = vpop.f32.mrb[0].mxu0
    %v154 = vpop.f32.mrb[0].mxu0
    %155 = vdwg.mxu0
    %v156 = vmax.f32 %v151, 0.0
    %v157 = vld [vmem:[%s3] sm:$0xf]
    %v158 = vld [vmem:[%s3 + $0x4] sm:$0xf]
    %v159 = vld [vmem:[%s3 + $0x8] sm:$0xf]
    %v160 = vld [vmem:[%s3 + $0xc] sm:$0xf]
    %v161 = vld [vmem:[%s3 + $0x10] sm:$0xf]
    %v162 = vld [vmem:[%s3 + $0x14] sm:$0xf]
    %v163 = vld [vmem:[%s3 + $0x18] sm:$0xf]
    %v164 = vld [vmem:[%s3 + $0x1c] sm:$0xf]
    %v165 = vld [vmem:[%s3 + $0x20] sm:$0xf]
    %v166 = vld [vmem:[%s3 + $0x24] sm:$0xf]
    %v167 = vld [vmem:[%s3 + $0x28] sm:$0xf]
    %v168 = vld [vmem:[%s3 + $0x2c] sm:$0xf]
    %v169 = vld [vmem:[%s3 + $0x30] sm:$0xf]
    %v170 = vld [vmem:[%s3 + $0x34] sm:$0xf]
    %v171 = vld [vmem:[%s3 + $0x38] sm:$0xf]
    %v172 = vld [vmem:[%s3 + $0x3c] sm:$0xf]
    %v173 = vld [vmem:[%s4] sm:$0x1]
    %v174 = vpack.c.bf16 %v156, %v156
    %v176 = vlaneseq
    %v177 = vshrl.u32 %v176, 7
    %v178 = vsub.s32 0, %v177
    %v179 = vrot.slane %v173, %v178
    %v197 = vunpack.c.l.b16 %v157
    %v198 = vunpack.c.l.b16 %v158
    %v199 = vunpack.c.l.b16 %v159
    %v200 = vunpack.c.l.b16 %v160
    %v201 = vunpack.c.l.b16 %v161
    %v202 = vunpack.c.l.b16 %v162
    %v203 = vunpack.c.l.b16 %v163
    %v204 = vunpack.c.l.b16 %v164
    %v205 = vunpack.c.l.b16 %v165
    %v206 = vunpack.c.l.b16 %v166
    %v207 = vunpack.c.l.b16 %v167
    %v208 = vunpack.c.l.b16 %v168
    %v209 = vunpack.c.l.b16 %v169
    %v210 = vunpack.c.l.b16 %v170
    %v211 = vunpack.c.l.b16 %v171
    %v212 = vunpack.c.l.b16 %v172
    %v213 = vpack.c.b16 %v198, %v197
    %v214 = vpack.c.b16 %v200, %v199
    %v215 = vpack.c.b16 %v202, %v201
    %v216 = vpack.c.b16 %v204, %v203
    %v217 = vpack.c.b16 %v206, %v205
    %v218 = vpack.c.b16 %v208, %v207
    %v219 = vpack.c.b16 %v210, %v209
    %v220 = vpack.c.b16 %v212, %v211
    %229 = vmatprep.subr.bf16.mxu0 0
    %230 = vmatpush1.bf16.msra.mxu0 %v213
    %231 = vmatprep.subr.bf16.mxu0 0
    %232 = vmatpush1.bf16.msra.mxu0 %v214
    %233 = vmatprep.subr.bf16.mxu0 0
    %234 = vmatpush1.bf16.msra.mxu0 %v215
    %235 = vmatprep.subr.bf16.mxu0 0
    %236 = vmatpush1.bf16.msra.mxu0 %v216
    %237 = vmatprep.subr.bf16.mxu0 0
    %238 = vmatpush1.bf16.msra.mxu0 %v217
    %239 = vmatprep.subr.bf16.mxu0 0
    %240 = vmatpush1.bf16.msra.mxu0 %v218
    %241 = vmatprep.subr.bf16.mxu0 0
    %242 = vmatpush1.bf16.msra.mxu0 %v219
    %243 = vmatprep.subr.bf16.mxu0 0
    %244 = vmatpush1.bf16.msra.mxu0 %v220
    %245 = vmatprep.subr.bf16.mxu0 0
    %246 = vmatpush1.bf16.msra.mxu0 0
    %247 = vmatprep.subr.bf16.mxu0 0
    %248 = vmatpush1.bf16.msra.mxu0 0
    %249 = vmatprep.subr.bf16.mxu0 0
    %250 = vmatpush1.bf16.msra.mxu0 0
    %251 = vmatprep.subr.bf16.mxu0 0
    %252 = vmatpush1.bf16.msra.mxu0 0
    %253 = vmatprep.subr.bf16.mxu0 0
    %254 = vmatpush1.bf16.msra.mxu0 0
    %255 = vmatprep.subr.bf16.mxu0 0
    %256 = vmatpush1.bf16.msra.mxu0 0
    %257 = vmatprep.subr.bf16.mxu0 0
    %258 = vmatpush1.bf16.msra.mxu0 0
    %259 = vmatprep.subr.bf16.mxu0 0
    %260 = vmatpush1.bf16.msra.mxu0 0
    %261 = vmatprep.mubr.bf16.mxu0 0
    %262 = vmatmul.mubr.bf16.gmra.mrb[0].mxu0 %v174
    %v263 = vpop.f32.mrb[0].mxu0
    %v264 = vadd.f32 %v179, %v263
    %v265 = vpop.f32.mrb[0].mxu0
    %v266 = vpop.f32.mrb[0].mxu0
    %v267 = vpop.f32.mrb[0].mxu0
    %268 = vdwg.mxu0
    %v269 = vmax.f32 %v264, 0.0
    %v270 = vld [vmem:[#allocation2] sm:$0xf]
    %v271 = vld [vmem:[#allocation2 + $0x4] sm:$0xf]
    %v272 = vld [vmem:[#allocation2 + $0x8] sm:$0xf]
    %v273 = vld [vmem:[#allocation2 + $0xc] sm:$0xf]
    %v274 = vld [vmem:[#allocation2 + $0x10] sm:$0xf]
    %v275 = vld [vmem:[#allocation2 + $0x14] sm:$0xf]
    %v276 = vld [vmem:[#allocation2 + $0x18] sm:$0xf]
    %v277 = vld [vmem:[#allocation2 + $0x1c] sm:$0xf]
    %v278 = vld [vmem:[#allocation2 + $0x20] sm:$0xf]
    %v279 = vld [vmem:[#allocation2 + $0x24] sm:$0xf]
    %v280 = vld [vmem:[#allocation2 + $0x28] sm:$0xf]
    %v281 = vld [vmem:[#allocation2 + $0x2c] sm:$0xf]
    %v282 = vld [vmem:[#allocation2 + $0x30] sm:$0xf]
    %v283 = vld [vmem:[#allocation2 + $0x34] sm:$0xf]
    %v284 = vld [vmem:[#allocation2 + $0x38] sm:$0xf]
    %v285 = vld [vmem:[#allocation2 + $0x3c] sm:$0xf]
    %v286 = vld [vmem:[%s6] sm:$0x1]
    %v287 = vpack.c.bf16 %v269, %v269
    %v289 = vlaneseq
    %v290 = vshrl.u32 %v289, 7
    %v291 = vsub.s32 0, %v290
    %v292 = vrot.slane %v286, %v291
    %v310 = vunpack.c.l.b16 %v270
    %v311 = vunpack.c.l.b16 %v271
    %v312 = vunpack.c.l.b16 %v272
    %v313 = vunpack.c.l.b16 %v273
    %v314 = vunpack.c.l.b16 %v274
    %v315 = vunpack.c.l.b16 %v275
    %v316 = vunpack.c.l.b16 %v276
    %v317 = vunpack.c.l.b16 %v277
    %v318 = vunpack.c.l.b16 %v278
    %v319 = vunpack.c.l.b16 %v279
    %v320 = vunpack.c.l.b16 %v280
    %v321 = vunpack.c.l.b16 %v281
    %v322 = vunpack.c.l.b16 %v282
    %v323 = vunpack.c.l.b16 %v283
    %v324 = vunpack.c.l.b16 %v284
    %v325 = vunpack.c.l.b16 %v285
    %v326 = vpack.c.b16 %v311, %v310
    %v327 = vpack.c.b16 %v313, %v312
    %v328 = vpack.c.b16 %v315, %v314
    %v329 = vpack.c.b16 %v317, %v316
    %v330 = vpack.c.b16 %v319, %v318
    %v331 = vpack.c.b16 %v321, %v320
    %v332 = vpack.c.b16 %v323, %v322
    %v333 = vpack.c.b16 %v325, %v324
    %342 = vmatprep.subr.bf16.mxu0 0
    %343 = vmatpush1.bf16.msra.mxu0 %v326
    %344 = vmatprep.subr.bf16.mxu0 0
    %345 = vmatpush1.bf16.msra.mxu0 %v327
    %346 = vmatprep.subr.bf16.mxu0 0
    %347 = vmatpush1.bf16.msra.mxu0 %v328
    %348 = vmatprep.subr.bf16.mxu0 0
    %349 = vmatpush1.bf16.msra.mxu0 %v329
    %350 = vmatprep.subr.bf16.mxu0 0
    %351 = vmatpush1.bf16.msra.mxu0 %v330
    %352 = vmatprep.subr.bf16.mxu0 0
    %353 = vmatpush1.bf16.msra.mxu0 %v331
    %354 = vmatprep.subr.bf16.mxu0 0
    %355 = vmatpush1.bf16.msra.mxu0 %v332
    %356 = vmatprep.subr.bf16.mxu0 0
    %357 = vmatpush1.bf16.msra.mxu0 %v333
    %358 = vmatprep.subr.bf16.mxu0 0
    %359 = vmatpush1.bf16.msra.mxu0 0
    %360 = vmatprep.subr.bf16.mxu0 0
    %361 = vmatpush1.bf16.msra.mxu0 0
    %362 = vmatprep.subr.bf16.mxu0 0
    %363 = vmatpush1.bf16.msra.mxu0 0
    %364 = vmatprep.subr.bf16.mxu0 0
    %365 = vmatpush1.bf16.msra.mxu0 0
    %366 = vmatprep.subr.bf16.mxu0 0
    %367 = vmatpush1.bf16.msra.mxu0 0
    %368 = vmatprep.subr.bf16.mxu0 0
    %369 = vmatpush1.bf16.msra.mxu0 0
    %370 = vmatprep.subr.bf16.mxu0 0
    %371 = vmatpush1.bf16.msra.mxu0 0
    %372 = vmatprep.subr.bf16.mxu0 0
    %373 = vmatpush1.bf16.msra.mxu0 0
    %374 = vmatprep.mubr.bf16.mxu0 0
    %375 = vmatmul.mubr.bf16.gmra.mrb[0].mxu0 %v287
    %v376 = vpop.f32.mrb[0].mxu0
    %v377 = vadd.f32 %v292, %v376
    %v378 = vpop.f32.mrb[0].mxu0
    %v379 = vpop.f32.mrb[0].mxu0
    %v380 = vpop.f32.mrb[0].mxu0
    %381 = vdwg.mxu0
    %v382 = vld [vmem:[#allocation5] sm:$0xf]
    %v383 = vld [vmem:[#allocation5 + $0x4] sm:$0xf]
    %v384 = vld [vmem:[#allocation5 + $0x8] sm:$0xf]
    %v385 = vld [vmem:[#allocation5 + $0xc] sm:$0xf]
    %v386 = vld [vmem:[#allocation5 + $0x10] sm:$0xf]
    %v387 = vld [vmem:[#allocation5 + $0x14] sm:$0xf]
    %v388 = vld [vmem:[#allocation5 + $0x18] sm:$0xf]
    %v389 = vld [vmem:[#allocation5 + $0x1c] sm:$0xf]
    %v390 = vld [vmem:[#allocation5 + $0x20] sm:$0xf]
    %v391 = vld [vmem:[#allocation5 + $0x24] sm:$0xf]
    %v392 = vld [vmem:[#allocation5 + $0x28] sm:$0xf]
    %v393 = vld [vmem:[#allocation5 + $0x2c] sm:$0xf]
    %v394 = vld [vmem:[#allocation5 + $0x30] sm:$0xf]
    %v395 = vld [vmem:[#allocation5 + $0x34] sm:$0xf]
    %v396 = vld [vmem:[#allocation5 + $0x38] sm:$0xf]
    %v397 = vld [vmem:[#allocation5 + $0x3c] sm:$0xf]
    %v398 = vld [vmem:[%s8] sm:$0x1]
    %v399 = vpack.c.bf16 %v377, %v377
    %v401 = vlaneseq
    %v402 = vshrl.u32 %v401, 7
    %v403 = vsub.s32 0, %v402
    %v404 = vrot.slane %v398, %v403
    %v422 = vunpack.c.l.b16 %v382
    %v423 = vunpack.c.l.b16 %v383
    %v424 = vunpack.c.l.b16 %v384
    %v425 = vunpack.c.l.b16 %v385
    %v426 = vunpack.c.l.b16 %v386
    %v427 = vunpack.c.l.b16 %v387
    %v428 = vunpack.c.l.b16 %v388
    %v429 = vunpack.c.l.b16 %v389
    %v430 = vunpack.c.l.b16 %v390
    %v431 = vunpack.c.l.b16 %v391
    %v432 = vunpack.c.l.b16 %v392
    %v433 = vunpack.c.l.b16 %v393
    %v434 = vunpack.c.l.b16 %v394
    %v435 = vunpack.c.l.b16 %v395
    %v436 = vunpack.c.l.b16 %v396
    %v437 = vunpack.c.l.b16 %v397
    %v438 = vpack.c.b16 %v423, %v422
    %v439 = vpack.c.b16 %v425, %v424
    %v440 = vpack.c.b16 %v427, %v426
    %v441 = vpack.c.b16 %v429, %v428
    %v442 = vpack.c.b16 %v431, %v430
    %v443 = vpack.c.b16 %v433, %v432
    %v444 = vpack.c.b16 %v435, %v434
    %v445 = vpack.c.b16 %v437, %v436
    %454 = vmatprep.subr.bf16.mxu0 0
    %455 = vmatpush1.bf16.msra.mxu0 %v438
    %456 = vmatprep.subr.bf16.mxu0 0
    %457 = vmatpush1.bf16.msra.mxu0 %v439
    %458 = vmatprep.subr.bf16.mxu0 0
    %459 = vmatpush1.bf16.msra.mxu0 %v440
    %460 = vmatprep.subr.bf16.mxu0 0
    %461 = vmatpush1.bf16.msra.mxu0 %v441
    %462 = vmatprep.subr.bf16.mxu0 0
    %463 = vmatpush1.bf16.msra.mxu0 %v442
    %464 = vmatprep.subr.bf16.mxu0 0
    %465 = vmatpush1.bf16.msra.mxu0 %v443
    %466 = vmatprep.subr.bf16.mxu0 0
    %467 = vmatpush1.bf16.msra.mxu0 %v444
    %468 = vmatprep.subr.bf16.mxu0 0
    %469 = vmatpush1.bf16.msra.mxu0 %v445
    %470 = vmatprep.subr.bf16.mxu0 0
    %471 = vmatpush1.bf16.msra.mxu0 0
    %472 = vmatprep.subr.bf16.mxu0 0
    %473 = vmatpush1.bf16.msra.mxu0 0
    %474 = vmatprep.subr.bf16.mxu0 0
    %475 = vmatpush1.bf16.msra.mxu0 0
    %476 = vmatprep.subr.bf16.mxu0 0
    %477 = vmatpush1.bf16.msra.mxu0 0
    %478 = vmatprep.subr.bf16.mxu0 0
    %479 = vmatpush1.bf16.msra.mxu0 0
    %480 = vmatprep.subr.bf16.mxu0 0
    %481 = vmatpush1.bf16.msra.mxu0 0
    %482 = vmatprep.subr.bf16.mxu0 0
    %483 = vmatpush1.bf16.msra.mxu0 0
    %484 = vmatprep.subr.bf16.mxu0 0
    %485 = vmatpush1.bf16.msra.mxu0 0
    %486 = vmatprep.mubr.bf16.mxu0 0
    %487 = vmatmul.mubr.bf16.gmra.mrb[0].mxu0 %v399
    %v488 = vpop.f32.mrb[0].mxu0
    %v489 = vadd.f32 %v404, %v488
    %v490 = vpop.f32.mrb[0].mxu0
    %v491 = vpop.f32.mrb[0].mxu0
    %v492 = vpop.f32.mrb[0].mxu0
    %493 = vdwg.mxu0
    %v494 = vmax.f32 %v489, 0.0
    %v495 = vld [vmem:[#allocation7] sm:$0xf]
    %v496 = vld [vmem:[#allocation7 + $0x4] sm:$0xf]
    %v497 = vld [vmem:[#allocation7 + $0x8] sm:$0xf]
    %v498 = vld [vmem:[#allocation7 + $0xc] sm:$0xf]
    %v499 = vld [vmem:[#allocation7 + $0x10] sm:$0xf]
    %v500 = vld [vmem:[#allocation7 + $0x14] sm:$0xf]
    %v501 = vld [vmem:[#allocation7 + $0x18] sm:$0xf]
    %v502 = vld [vmem:[#allocation7 + $0x1c] sm:$0xf]
    %v503 = vld [vmem:[#allocation7 + $0x20] sm:$0xf]
    %v504 = vld [vmem:[#allocation7 + $0x24] sm:$0xf]
    %v505 = vld [vmem:[#allocation7 + $0x28] sm:$0xf]
    %v506 = vld [vmem:[#allocation7 + $0x2c] sm:$0xf]
    %v507 = vld [vmem:[#allocation7 + $0x30] sm:$0xf]
    %v508 = vld [vmem:[#allocation7 + $0x34] sm:$0xf]
    %v509 = vld [vmem:[#allocation7 + $0x38] sm:$0xf]
    %v510 = vld [vmem:[#allocation7 + $0x3c] sm:$0xf]
    %v511 = vld [vmem:[%s10] sm:$0x1]
    %v512 = vpack.c.bf16 %v494, %v494
    %v514 = vlaneseq
    %v515 = vshrl.u32 %v514, 7
    %v516 = vsub.s32 0, %v515
    %v517 = vrot.slane %v511, %v516
    %v535 = vunpack.c.l.b16 %v495
    %v536 = vunpack.c.l.b16 %v496
    %v537 = vunpack.c.l.b16 %v497
    %v538 = vunpack.c.l.b16 %v498
    %v539 = vunpack.c.l.b16 %v499
    %v540 = vunpack.c.l.b16 %v500
    %v541 = vunpack.c.l.b16 %v501
    %v542 = vunpack.c.l.b16 %v502
    %v543 = vunpack.c.l.b16 %v503
    %v544 = vunpack.c.l.b16 %v504
    %v545 = vunpack.c.l.b16 %v505
    %v546 = vunpack.c.l.b16 %v506
    %v547 = vunpack.c.l.b16 %v507
    %v548 = vunpack.c.l.b16 %v508
    %v549 = vunpack.c.l.b16 %v509
    %v550 = vunpack.c.l.b16 %v510
    %v551 = vpack.c.b16 %v536, %v535
    %v552 = vpack.c.b16 %v538, %v537
    %v553 = vpack.c.b16 %v540, %v539
    %v554 = vpack.c.b16 %v542, %v541
    %v555 = vpack.c.b16 %v544, %v543
    %v556 = vpack.c.b16 %v546, %v545
    %v557 = vpack.c.b16 %v548, %v547
    %v558 = vpack.c.b16 %v550, %v549
    %567 = vmatprep.subr.bf16.mxu0 0
    %568 = vmatpush1.bf16.msra.mxu0 %v551
    %569 = vmatprep.subr.bf16.mxu0 0
    %570 = vmatpush1.bf16.msra.mxu0 %v552
    %571 = vmatprep.subr.bf16.mxu0 0
    %572 = vmatpush1.bf16.msra.mxu0 %v553
    %573 = vmatprep.subr.bf16.mxu0 0
    %574 = vmatpush1.bf16.msra.mxu0 %v554
    %575 = vmatprep.subr.bf16.mxu0 0
    %576 = vmatpush1.bf16.msra.mxu0 %v555
    %577 = vmatprep.subr.bf16.mxu0 0
    %578 = vmatpush1.bf16.msra.mxu0 %v556
    %579 = vmatprep.subr.bf16.mxu0 0
    %580 = vmatpush1.bf16.msra.mxu0 %v557
    %581 = vmatprep.subr.bf16.mxu0 0
    %582 = vmatpush1.bf16.msra.mxu0 %v558
    %583 = vmatprep.subr.bf16.mxu0 0
    %584 = vmatpush1.bf16.msra.mxu0 0
    %585 = vmatprep.subr.bf16.mxu0 0
    %586 = vmatpush1.bf16.msra.mxu0 0
    %587 = vmatprep.subr.bf16.mxu0 0
    %588 = vmatpush1.bf16.msra.mxu0 0
    %589 = vmatprep.subr.bf16.mxu0 0
    %590 = vmatpush1.bf16.msra.mxu0 0
    %591 = vmatprep.subr.bf16.mxu0 0
    %592 = vmatpush1.bf16.msra.mxu0 0
    %593 = vmatprep.subr.bf16.mxu0 0
    %594 = vmatpush1.bf16.msra.mxu0 0
    %595 = vmatprep.subr.bf16.mxu0 0
    %596 = vmatpush1.bf16.msra.mxu0 0
    %597 = vmatprep.subr.bf16.mxu0 0
    %598 = vmatpush1.bf16.msra.mxu0 0
    %599 = vmatprep.mubr.bf16.mxu0 0
    %600 = vmatmul.mubr.bf16.gmra.mrb[0].mxu0 %v512
    %v601 = vpop.f32.mrb[0].mxu0
    %v602 = vadd.f32 %v517, %v601
    %v603 = vpop.f32.mrb[0].mxu0
    %v604 = vpop.f32.mrb[0].mxu0
    %v605 = vpop.f32.mrb[0].mxu0
    %606 = vdwg.mxu0
    %v607 = vmax.f32 %v602, 0.0
    %v608 = vld [vmem:[%s11] sm:$0xf]
    %v609 = vld [vmem:[%s11 + $0x4] sm:$0xf]
    %v610 = vld [vmem:[%s11 + $0x8] sm:$0xf]
    %v611 = vld [vmem:[%s11 + $0xc] sm:$0xf]
    %v612 = vld [vmem:[%s11 + $0x10] sm:$0xf]
    %v613 = vld [vmem:[%s11 + $0x14] sm:$0xf]
    %v614 = vld [vmem:[%s11 + $0x18] sm:$0xf]
    %v615 = vld [vmem:[%s11 + $0x1c] sm:$0xf]
    %v616 = vld [vmem:[%s11 + $0x20] sm:$0xf]
    %v617 = vld [vmem:[%s11 + $0x24] sm:$0xf]
    %v618 = vld [vmem:[%s11 + $0x28] sm:$0xf]
    %v619 = vld [vmem:[%s11 + $0x2c] sm:$0xf]
    %v620 = vld [vmem:[%s11 + $0x30] sm:$0xf]
    %v621 = vld [vmem:[%s11 + $0x34] sm:$0xf]
    %v622 = vld [vmem:[%s11 + $0x38] sm:$0xf]
    %v623 = vld [vmem:[%s11 + $0x3c] sm:$0xf]
    %v624 = vld [vmem:[%s12] sm:$0x1]
    %v625 = vpack.c.bf16 %v607, %v607
    %v627 = vlaneseq
    %v628 = vshrl.u32 %v627, 7
    %v629 = vsub.s32 0, %v628
    %v630 = vrot.slane %v624, %v629
    %v648 = vunpack.c.l.b16 %v608
    %v649 = vunpack.c.l.b16 %v609
    %v650 = vunpack.c.l.b16 %v610
    %v651 = vunpack.c.l.b16 %v611
    %v652 = vunpack.c.l.b16 %v612
    %v653 = vunpack.c.l.b16 %v613
    %v654 = vunpack.c.l.b16 %v614
    %v655 = vunpack.c.l.b16 %v615
    %v656 = vunpack.c.l.b16 %v616
    %v657 = vunpack.c.l.b16 %v617
    %v658 = vunpack.c.l.b16 %v618
    %v659 = vunpack.c.l.b16 %v619
    %v660 = vunpack.c.l.b16 %v620
    %v661 = vunpack.c.l.b16 %v621
    %v662 = vunpack.c.l.b16 %v622
    %v663 = vunpack.c.l.b16 %v623
    %v664 = vpack.c.b16 %v649, %v648
    %v665 = vpack.c.b16 %v651, %v650
    %v666 = vpack.c.b16 %v653, %v652
    %v667 = vpack.c.b16 %v655, %v654
    %v668 = vpack.c.b16 %v657, %v656
    %v669 = vpack.c.b16 %v659, %v658
    %v670 = vpack.c.b16 %v661, %v660
    %v671 = vpack.c.b16 %v663, %v662
    %680 = vmatprep.subr.bf16.mxu0 0
    %681 = vmatpush1.bf16.msra.mxu0 %v664
    %682 = vmatprep.subr.bf16.mxu0 0
    %683 = vmatpush1.bf16.msra.mxu0 %v665
    %684 = vmatprep.subr.bf16.mxu0 0
    %685 = vmatpush1.bf16.msra.mxu0 %v666
    %686 = vmatprep.subr.bf16.mxu0 0
    %687 = vmatpush1.bf16.msra.mxu0 %v667
    %688 = vmatprep.subr.bf16.mxu0 0
    %689 = vmatpush1.bf16.msra.mxu0 %v668
    %690 = vmatprep.subr.bf16.mxu0 0
    %691 = vmatpush1.bf16.msra.mxu0 %v669
    %692 = vmatprep.subr.bf16.mxu0 0
    %693 = vmatpush1.bf16.msra.mxu0 %v670
    %694 = vmatprep.subr.bf16.mxu0 0
    %695 = vmatpush1.bf16.msra.mxu0 %v671
    %696 = vmatprep.subr.bf16.mxu0 0
    %697 = vmatpush1.bf16.msra.mxu0 0
    %698 = vmatprep.subr.bf16.mxu0 0
    %699 = vmatpush1.bf16.msra.mxu0 0
    %700 = vmatprep.subr.bf16.mxu0 0
    %701 = vmatpush1.bf16.msra.mxu0 0
    %702 = vmatprep.subr.bf16.mxu0 0
    %703 = vmatpush1.bf16.msra.mxu0 0
    %704 = vmatprep.subr.bf16.mxu0 0
    %705 = vmatpush1.bf16.msra.mxu0 0
    %706 = vmatprep.subr.bf16.mxu0 0
    %707 = vmatpush1.bf16.msra.mxu0 0
    %708 = vmatprep.subr.bf16.mxu0 0
    %709 = vmatpush1.bf16.msra.mxu0 0
    %710 = vmatprep.subr.bf16.mxu0 0
    %711 = vmatpush1.bf16.msra.mxu0 0
    %712 = vmatprep.mubr.bf16.mxu0 0
    %713 = vmatmul.mubr.bf16.gmra.mrb[0].mxu0 %v625
    %v714 = vpop.f32.mrb[0].mxu0
    %v715 = vadd.f32 %v630, %v714
    %v716 = vpop.f32.mrb[0].mxu0
    %v717 = vpop.f32.mrb[0].mxu0
    %v718 = vpop.f32.mrb[0].mxu0
    %719 = vdwg.mxu0
    %720 = vst.msk [vmem:[#allocation8] sm:$0xff] %vm112, %v715
    // Predicated region
    $region66: #{tpu_custom_call.1} parent=1 // pred_check
      _
    $region67: #{tpu_custom_call.1} parent=1 // pred_check_branch
      %722 = sbr.rel (0) target = $region69
    $region68: #{tpu_custom_call.1} parent=1 // pred_region
      %s724 = ssub.s32 128, 32
      %725 = vsyncadd [#allocation4], %s724
      %s726 = sshll.u32 [#allocation8], 4
      %s727 = int_to_ptr.vmem [resolvable:$true] %s726
      %732 = dma.vmem_to_hbm [thread:$0]  %s727, 32, %s13, [#allocation4], 32, 32, 2
    $region69: #{tpu_custom_call.1} parent=1 // pred_fallthru
      _
    // Predicated region
    $region70: #{tpu_custom_call.1} parent=1 // pred_check
      _
    $region71: #{tpu_custom_call.1} parent=1 // pred_check_branch
      %734 = sbr.rel (0) target = $region73
    $region72: #{tpu_custom_call.1} parent=1 // pred_region
      %735 = dma.done [#allocation4], 128
    $region73: #{tpu_custom_call.1} parent=1 // pred_fallthru
      _
    %736 = vsyncpa [#allocation3], 1
    %737 = vsyncpa [#allocation6], 1
    %738 = vsyncpa [#allocation4], 1

</llo_original>
